<compile_context>
chip_gen: v5e
topology: v5e:2x2
jax: 0.10.0
libtpu: 0.0.40
codegen_flags: <defaults>
</compile_context>

<pallas_src>
import functools

import jax
import jax.numpy as jnp
from jax import lax
from jax.experimental import pallas as pl
from jax.experimental.pallas import tpu as pltpu

EPS = 1e-5

# Conservative budgets, safe on v5e/v6e (128 MiB VMEM) and v7x (64 MiB per TC).
_FAST_PATH_MAX_F32_BYTES = 4 * 1024 * 1024   # fused VMEM-resident path gate
_BLOCK_TARGET_BYTES = 4 * 1024 * 1024        # per-step f32 block budget (tiled path)
_VMEM_LIMIT_BYTES = 48 * 1024 * 1024         # < v7x physical 64 MiB


def _round_up(x, m):
    return -(-x // m) * m


def _plan_tiles(n, c, hw, target_bytes=_BLOCK_TARGET_BYTES):
    """Pick (BN, TM, HW_pad) so that (BN, C, TM) f32 blocks are ~target_bytes.

    TM is a multiple of 128 (lane dense). Prefer a divisor of HW (no padding);
    otherwise pad HW with zeros (harmless for raw sum / sum-of-squares).
    """
    target_elems = max(128, target_bytes // 4)
    tm_budget = max(128, (target_elems // max(c, 1)) // 128 * 128)
    if hw <= tm_budget:
        tm = _round_up(hw, 128)
    elif hw % 128 == 0:
        best = 128
        t = 256
        while t <= tm_budget:
            if hw % t == 0:
                best = t
            t += 128
        # If the best divisor wastes more than half the budget, pad instead.
        tm = best if 2 * best >= tm_budget else tm_budget
    else:
        tm = tm_budget
    hw_pad = _round_up(hw, tm)
    # Block several batch samples per step when the spatial extent alone can't
    # fill the budget, but keep >= 2 steps on the (parallel) batch grid axis so
    # the stats pass can shard across v7x's two TensorCores.
    bn_budget = max(1, target_elems // (c * tm))
    bn_cap = min(bn_budget, max(1, n // 2)) if n > 1 else 1
    bn = 1
    for d in range(bn_cap, 0, -1):
        if n % d == 0:
            bn = d
            break
    return bn, tm, hw_pad


def _fused_bn_kernel(x_ref, gamma_ref, beta_ref, o_ref, *, inv_count):
    # Whole array resident in VMEM: one HBM read + one HBM write.
    x = x_ref[...].astype(jnp.float32)                       # (N, C, HW)
    s = jnp.sum(jnp.sum(x, axis=2, keepdims=True), axis=0, keepdims=True)
    mean = s * inv_count                                     # (1, C, 1)
    xc = x - mean
    sq = jnp.sum(jnp.sum(xc * xc, axis=2, keepdims=True), axis=0, keepdims=True)
    var = sq * inv_count                                     # biased, centered
    scale = gamma_ref[...][None] * lax.rsqrt(var + EPS)      # (1, C, 1)
    o_ref[...] = (xc * scale + beta_ref[...][None]).astype(o_ref.dtype)


def _stats_kernel(x_ref, psum_ref, psq_ref):
    # x_ref: (BN, C, TM); psum/psq: (1, C, 1) per-batch-block partial sums,
    # accumulated in the (resident) output block across the spatial grid axis.
    @pl.when(pl.program_id(1) == 0)
    def _init():
        psum_ref[...] = jnp.zeros_like(psum_ref)
        psq_ref[...] = jnp.zeros_like(psq_ref)

    x = x_ref[...].astype(jnp.float32)
    psum_ref[...] += jnp.sum(jnp.sum(x, axis=2, keepdims=True),
                             axis=0, keepdims=True)
    psq_ref[...] += jnp.sum(jnp.sum(x * x, axis=2, keepdims=True),
                            axis=0, keepdims=True)


def _norm_kernel(x_ref, scale_ref, shift_ref, o_ref):
    # Single fused pass: y = x * scale + shift  (affine folded into scale/shift).
    x = x_ref[...].astype(jnp.float32)                       # (BN, C, TM)
    y = x * scale_ref[...][None] + shift_ref[...][None]
    o_ref[...] = y.astype(o_ref.dtype)


def identity_forward(x_nchw, gamma, beta, *, force_tiled=False):
    """Training-mode BatchNorm2d forward (per-channel stats over N, H, W)."""
    N, C, H, W = x_nchw.shape
    HW = H * W
    inv_count = 1.0 / float(N * HW)

    x3 = x_nchw.reshape(N, C, HW)                 # free reshape, no transpose
    gamma2 = gamma.reshape(C, 1).astype(jnp.float32)
    beta2 = beta.reshape(C, 1).astype(jnp.float32)

    f32_bytes = N * C * HW * 4

    if not force_tiled and f32_bytes <= _FAST_PATH_MAX_F32_BYTES:
        # Small/medium arrays (incl. the shipped test size): single fused
        # kernel, x resident in VMEM; reads x once, writes y once.
        y3 = pl.pallas_call(
            functools.partial(_fused_bn_kernel, inv_count=inv_count),
            out_shape=jax.ShapeDtypeStruct((N, C, HW), x_nchw.dtype),
            grid=(1,),
            in_specs=[
                pl.BlockSpec((N, C, HW), lambda i: (0, 0, 0)),
                pl.BlockSpec((C, 1), lambda i: (0, 0)),
                pl.BlockSpec((C, 1), lambda i: (0, 0)),
            ],
            out_specs=pl.BlockSpec((N, C, HW), lambda i: (0, 0, 0)),
            compiler_params=pltpu.CompilerParams(
                dimension_semantics=("arbitrary",),
                vmem_limit_bytes=_VMEM_LIMIT_BYTES),
        )(x3, gamma2, beta2)
        return y3.reshape(N, C, H, W)

    # ---------------- Tiled two-pass path ----------------
    BN, TM, HW_pad = _plan_tiles(N, C, HW)
    if HW_pad != HW:
        # Zero padding is exact here: zeros add nothing to sum / sum-of-squares
        # (true element count N*H*W is used for the mean), and the padded lanes
        # of the normalized output are sliced off below.
        x3 = jnp.pad(x3, ((0, 0), (0, 0), (0, HW_pad - HW)))
    NB = N // BN
    n_m = HW_pad // TM

    # Pass 1: per-batch-block partial sums / sums-of-squares (parallel over NB).
    psum, psq = pl.pallas_call(
        _stats_kernel,
        out_shape=(jax.ShapeDtypeStruct((NB, C, 1), jnp.float32),
                   jax.ShapeDtypeStruct((NB, C, 1), jnp.float32)),
        grid_spec=pltpu.PrefetchScalarGridSpec(
            num_scalar_prefetch=0,
            grid=(NB, n_m),
            in_specs=[pl.BlockSpec((BN, C, TM), lambda n, m: (n, 0, m))],
            out_specs=[pl.BlockSpec((1, C, 1), lambda n, m: (n, 0, 0)),
                       pl.BlockSpec((1, C, 1), lambda n, m: (n, 0, 0))],
        ),
        compiler_params=pltpu.CompilerParams(
            dimension_semantics=("parallel", "arbitrary"),
            vmem_limit_bytes=_VMEM_LIMIT_BYTES),
    )(x3)

    # Tiny per-channel fold in plain JAX (keeps gamma/beta out of the hot loop).
    # TODO(synk): E[x^2]-E[x]^2 in f32 can lose precision for very large channel
    # means; a Welford/shifted-mean accumulation would be more robust.
    total = jnp.sum(psum, axis=0)                  # (C, 1)
    totsq = jnp.sum(psq, axis=0)
    mean = total * inv_count
    var = totsq * inv_count - mean * mean          # biased variance
    scale = gamma2 * lax.rsqrt(var + EPS)
    shift = beta2 - mean * scale

    # Pass 2: fully parallel fused normalize y = x*scale + shift.
    y3 = pl.pallas_call(
        _norm_kernel,
        out_shape=jax.ShapeDtypeStruct((N, C, HW_pad), x_nchw.dtype),
        grid_spec=pltpu.PrefetchScalarGridSpec(
            num_scalar_prefetch=0,
            grid=(NB, n_m),
            in_specs=[
                pl.BlockSpec((BN, C, TM), lambda n, m: (n, 0, m)),
                pl.BlockSpec((C, 1), lambda n, m: (0, 0)),
                pl.BlockSpec((C, 1), lambda n, m: (0, 0)),
            ],
            out_specs=pl.BlockSpec((BN, C, TM), lambda n, m: (n, 0, m)),
        ),
        compiler_params=pltpu.CompilerParams(
            dimension_semantics=("parallel", "parallel"),
            vmem_limit_bytes=_VMEM_LIMIT_BYTES),
    )(x3, scale, shift)

    if HW_pad != HW:
        y3 = y3[:, :, :HW]
    return y3.reshape(N, C, H, W)


def _bn_reference(x, gamma, beta):
    mean = jnp.mean(x, axis=(0, 2, 3), keepdims=True)
    var = jnp.mean((x - mean) ** 2, axis=(0, 2, 3), keepdims=True)
    y = (x - mean) * lax.rsqrt(var + EPS)
    return y * gamma.reshape(1, -1, 1, 1) + beta.reshape(1, -1, 1, 1)


if __name__ == "__main__":
    # Module config (synthetic, deterministic init): out_channels=4, groups=1, affine=True
    out_channels, groups, affine = 4, 1, True

    key = jax.random.PRNGKey(0)
    k1, k2, k3, k4 = jax.random.split(key, 4)

    # Module-consistent small shape: hits the fused VMEM-resident fast path.
    x = jax.random.normal(k1, (2, out_channels, 16, 16), dtype=jnp.float32)
    gamma = jnp.ones((out_channels,), dtype=jnp.float32)   # PyTorch init: weight=1
    beta = jnp.zeros((out_channels,), dtype=jnp.float32)   # bias=0
    # TODO(synk): running_mean/running_var buffer updates (training side effect)
    # are not modeled; they do not affect the training-mode forward output.

    y = jax.block_until_ready(identity_forward(x, gamma, beta))
    assert jnp.allclose(y, _bn_reference(x, gamma, beta), atol=1e-4, rtol=1e-4), \
        "fast-path mismatch vs reference"

    # Also exercise the tiled two-pass path (non-128-multiple HW -> zero
    # padding, partial-sum fold, affine scale/shift) at a small shape.
    C2 = 8
    x2 = 3.0 + 2.0 * jax.random.normal(k2, (4, C2, 10, 10), dtype=jnp.float32)
    gamma2 = jax.random.normal(k3, (C2,), dtype=jnp.float32)
    beta2 = jax.random.normal(k4, (C2,), dtype=jnp.float32)
    y2 = jax.block_until_ready(
        identity_forward(x2, gamma2, beta2, force_tiled=True))
    assert jnp.allclose(y2, _bn_reference(x2, gamma2, beta2), atol=1e-4, rtol=1e-4), \
        "tiled-path mismatch vs reference"

    print("KERNEL_OK")
</pallas_src>

<mosaic_0001>
module attributes {stable_mosaic.version = 11 : i64} {
  func.func @_fused_bn_kernel(%arg0: i32, %arg1: memref<2x4x256xf32, #tpu.memory_space<vmem>>, %arg2: memref<4x1xf32, #tpu.memory_space<vmem>>, %arg3: memref<4x1xf32, #tpu.memory_space<vmem>>, %arg4: memref<2x4x256xf32, #tpu.memory_space<vmem>>) attributes {dimension_semantics = [#tpu.dimension_semantics<arbitrary>], iteration_bounds = array<i64: 1>, scalar_prefetch = 0 : i64, scratch_operands = 0 : i64, tpu.core_type = #tpu.core_type<tc>, window_params = [{pipeline_mode = #tpu.pipeline_mode<synchronous>, transform_indices = @transform_0, window_bounds = array<i64: 2, 4, 256>}, {pipeline_mode = #tpu.pipeline_mode<synchronous>, transform_indices = @transform_1, window_bounds = array<i64: 4, 1>}, {pipeline_mode = #tpu.pipeline_mode<synchronous>, transform_indices = @transform_2, window_bounds = array<i64: 4, 1>}, {pipeline_mode = #tpu.pipeline_mode<synchronous>, transform_indices = @transform_3, window_bounds = array<i64: 2, 4, 256>}]} {
    %c0 = arith.constant 0 : index
    %c0_0 = arith.constant 0 : index
    %c0_1 = arith.constant 0 : index
    %0 = vector.load %arg1[%c0, %c0_0, %c0_1] : memref<2x4x256xf32, #tpu.memory_space<vmem>>, vector<2x4x256xf32>
    %cst = arith.constant dense<0.000000e+00> : vector<2x4xf32>
    %1 = vector.multi_reduction <add>, %0, %cst [2] : vector<2x4x256xf32> to vector<2x4xf32>
    %2 = vector.shape_cast %1 : vector<2x4xf32> to vector<2x4x1xf32>
    %cst_2 = arith.constant dense<0.000000e+00> : vector<4x1xf32>
    %3 = vector.multi_reduction <add>, %2, %cst_2 [0] : vector<2x4x1xf32> to vector<4x1xf32>
    %4 = vector.shape_cast %3 : vector<4x1xf32> to vector<1x4x1xf32>
    %cst_3 = arith.constant 0.001953125 : f32
    %5 = vector.broadcast %cst_3 : f32 to vector<1x4x1xf32>
    %6 = arith.mulf %4, %5 : vector<1x4x1xf32>
    %7 = vector.broadcast %6 : vector<1x4x1xf32> to vector<2x4x256xf32>
    %8 = arith.subf %0, %7 : vector<2x4x256xf32>
    %9 = arith.mulf %8, %8 : vector<2x4x256xf32>
    %cst_4 = arith.constant dense<0.000000e+00> : vector<2x4xf32>
    %10 = vector.multi_reduction <add>, %9, %cst_4 [2] : vector<2x4x256xf32> to vector<2x4xf32>
    %11 = vector.shape_cast %10 : vector<2x4xf32> to vector<2x4x1xf32>
    %cst_5 = arith.constant dense<0.000000e+00> : vector<4x1xf32>
    %12 = vector.multi_reduction <add>, %11, %cst_5 [0] : vector<2x4x1xf32> to vector<4x1xf32>
    %13 = vector.shape_cast %12 : vector<4x1xf32> to vector<1x4x1xf32>
    %cst_6 = arith.constant 0.001953125 : f32
    %14 = vector.broadcast %cst_6 : f32 to vector<1x4x1xf32>
    %15 = arith.mulf %13, %14 : vector<1x4x1xf32>
    %c0_7 = arith.constant 0 : index
    %c0_8 = arith.constant 0 : index
    %16 = vector.load %arg2[%c0_7, %c0_8] : memref<4x1xf32, #tpu.memory_space<vmem>>, vector<4x1xf32>
    %17 = vector.shape_cast %16 : vector<4x1xf32> to vector<1x4x1xf32>
    %cst_9 = arith.constant 9.99999974E-6 : f32
    %18 = vector.broadcast %cst_9 : f32 to vector<1x4x1xf32>
    %19 = arith.addf %15, %18 : vector<1x4x1xf32>
    %20 = math.rsqrt %19 : vector<1x4x1xf32>
    %21 = arith.mulf %17, %20 : vector<1x4x1xf32>
    %22 = vector.broadcast %21 : vector<1x4x1xf32> to vector<2x4x256xf32>
    %23 = arith.mulf %8, %22 : vector<2x4x256xf32>
    %c0_10 = arith.constant 0 : index
    %c0_11 = arith.constant 0 : index
    %24 = vector.load %arg3[%c0_10, %c0_11] : memref<4x1xf32, #tpu.memory_space<vmem>>, vector<4x1xf32>
    %25 = vector.shape_cast %24 : vector<4x1xf32> to vector<1x4x1xf32>
    %26 = vector.broadcast %25 : vector<1x4x1xf32> to vector<2x4x256xf32>
    %27 = arith.addf %23, %26 : vector<2x4x256xf32>
    %c0_12 = arith.constant 0 : index
    %c0_13 = arith.constant 0 : index
    %c0_14 = arith.constant 0 : index
    %28 = vector.load %arg4[%c0_12, %c0_13, %c0_14] : memref<2x4x256xf32, #tpu.memory_space<vmem>>, vector<2x4x256xf32>
    tpu.vector_store %arg4[%c0_12, %c0_13, %c0_14], %27 {strides = array<i32>} : memref<2x4x256xf32, #tpu.memory_space<vmem>>, vector<2x4x256xf32>,
    return
  }
  func.func @transform_0(%arg0: i32) -> (i32, i32, i32) {
    %c0_i32 = arith.constant 0 : i32
    %c0_i32_0 = arith.constant 0 : i32
    %c0_i32_1 = arith.constant 0 : i32
    %c0_i32_2 = arith.constant 0 : i32
    return %c0_i32, %c0_i32_0, %c0_i32_1 : i32, i32, i32
  }
  func.func @transform_1(%arg0: i32) -> (i32, i32) {
    %c0_i32 = arith.constant 0 : i32
    %c0_i32_0 = arith.constant 0 : i32
    %c0_i32_1 = arith.constant 0 : i32
    return %c0_i32, %c0_i32_0 : i32, i32
  }
  func.func @transform_2(%arg0: i32) -> (i32, i32) {
    %c0_i32 = arith.constant 0 : i32
    %c0_i32_0 = arith.constant 0 : i32
    %c0_i32_1 = arith.constant 0 : i32
    return %c0_i32, %c0_i32_0 : i32, i32
  }
  func.func @transform_3(%arg0: i32) -> (i32, i32, i32) {
    %c0_i32 = arith.constant 0 : i32
    %c0_i32_0 = arith.constant 0 : i32
    %c0_i32_1 = arith.constant 0 : i32
    %c0_i32_2 = arith.constant 0 : i32
    return %c0_i32, %c0_i32_0, %c0_i32_1 : i32, i32, i32
  }
}

</mosaic_0001>

<llo_original>
// kernel: tpu_custom_call.1
$region0: #{tpu_custom_call.1}
  #allocation0 [shape = 'u32[]', space=smem, size = 0x4, offset = 0x4, fixed_abs, tag = 'smem constant byte address 0x4 - core index']
  #allocation1 [shape = 'u32[72,128]{1,0:T(1,128)}', space=vmem, size = 0x9000, scoped, tag = 'internal scratch']
  %s0 = inlined_call_operand.hbm [shape: f32[2,4,256], index: 0, kind: input, shape index: {}]
  %s1 = inlined_call_operand.vmem [shape: f32[4,1], index: 1, kind: input, shape index: {}]
  %s2 = inlined_call_operand.vmem [shape: f32[4,1], index: 2, kind: input, shape index: {}]
  %s3 = inlined_call_operand.hbm [shape: f32[2,4,256], index: 3, kind: output, shape index: {}]
  %s4 = sld [smem:[#allocation0]]
  $region26: #{tpu_custom_call.1} parent=0
    _
  %s6 = ssub.s32 1, %s4
  %s7 = scalar_select 0, %s6, %s4
  $region1: #{tpu_custom_call.1} parent=0
    #allocation2 [shape = 'u8[8192]{0}', space=vmem, size = 0x2000, scoped, tag = 'input window, operand 0, single buffered']
    #allocation3 [shape = 's32[1]{0}', space=sflag, size = 0x4, scoped, tag = 'scoped memory for tpu_custom_call.1']
    #allocation4 [shape = 's32[1]{0}', space=sflag, size = 0x4, scoped, tag = 'scoped memory for tpu_custom_call.1']
    #allocation5 [shape = 'u8[8192]{0}', space=vmem, size = 0x2000, scoped, tag = 'output window, operand 0, single buffered']
    %8 = vsyncpa [#allocation3], 0
    %9 = vsyncpa [#allocation4], 0
    // Predicated region
    $region2: #{tpu_custom_call.1} parent=1 // pred_check
      _
    $region3: #{tpu_custom_call.1} parent=1 // pred_check_branch
      %11 = sbr.rel (0) target = $region5
    $region4: #{tpu_custom_call.1} parent=1 // pred_region
      %13 = vsyncadd [#allocation3], 0
      %s14 = sshll.u32 %s0, 4
      %s15 = int_to_ptr.hbm [resolvable:$true] %s14
      %s16 = sshll.u32 [#allocation2], 4
      %s17 = int_to_ptr.vmem [resolvable:$true] %s16
      %22 = dma.hbm_to_vmem [thread:$0]  %s15, 256, %s17, [#allocation3], 128, 128, 8
    $region5: #{tpu_custom_call.1} parent=1 // pred_fallthru
      _
    // Predicated region
    $region6: #{tpu_custom_call.1} parent=1 // pred_check
      _
    $region7: #{tpu_custom_call.1} parent=1 // pred_check_branch
      %24 = sbr.rel (0) target = $region9
    $region8: #{tpu_custom_call.1} parent=1 // pred_region
      _
    $region9: #{tpu_custom_call.1} parent=1 // pred_fallthru
      _
    // Predicated region
    $region10: #{tpu_custom_call.1} parent=1 // pred_check
      _
    $region11: #{tpu_custom_call.1} parent=1 // pred_check_branch
      %26 = sbr.rel (0) target = $region13
    $region12: #{tpu_custom_call.1} parent=1 // pred_region
      _
    $region13: #{tpu_custom_call.1} parent=1 // pred_fallthru
      _
    // Predicated region
    $region14: #{tpu_custom_call.1} parent=1 // pred_check
      _
    $region15: #{tpu_custom_call.1} parent=1 // pred_check_branch
      %28 = sbr.rel (0) target = $region17
    $region16: #{tpu_custom_call.1} parent=1 // pred_region
      %30 = dma.done [#allocation3], 256
    $region17: #{tpu_custom_call.1} parent=1 // pred_fallthru
      _
    %v31 = vld [vmem:[#allocation2] sm:$0xff]
    %v32 = vld [vmem:[#allocation2 + $0x8] sm:$0xff]
    %35 = vst [vmem:[#allocation1] ss:$2 sm:$0xff] %v31
    %v36 = vld.sshfl [vmem:[#allocation1] sm:$0xff pattern:$0x75316420]
    %v37 = vld.sshfl [vmem:[#allocation1 + $0x8] sm:$0xff pattern:$0x75316420]
    %s38 = scalar_lea.vmem [#allocation1], 16
    %39 = vst [vmem:[%s38] ss:$2 sm:$0xff] %v32
    %v40 = vld.sshfl [vmem:[#allocation1 + $0x10] sm:$0xff pattern:$0x75316420]
    %v41 = vld.sshfl [vmem:[#allocation1 + $0x18] sm:$0xff pattern:$0x75316420]
    %vm46 = vcmask 1043456
    %v47 = vsel %vm46, %v36, 0.0
    %v48 = vsel %vm46, %v37, 0.0
    %v49 = vadd.f32 %v47, %v48
    %50 = vadd.xlane.f32.xlu0 %v49
    %v51 = vpop.xlane.xlu0 %50
    %v52 = vsel %vm46, %v40, 0.0
    %v53 = vsel %vm46, %v41, 0.0
    %v54 = vadd.f32 %v52, %v53
    %55 = vadd.xlane.f32.xlu0 %v54
    %v56 = vpop.xlane.xlu0 %55
    %v57 = vsel %vm46, %v51, 0.0
    %v58 = vsel %vm46, %v56, 0.0
    %v59 = vadd.f32 %v57, %v58
    %v60 = vmul.f32 %v59, 0.001953125
    %v63 = vunpack.c.l.s4 839922192
    %v64 = vunpack.c.0.s8 %v63
    %v65 = vperm.slane %v60, %v64
    %v67 = vsub.f32 %v31, %v65
    %v68 = vsub.f32 %v32, %v65
    %v69 = vmul.f32 %v67, %v67
    %v70 = vmul.f32 %v68, %v68
    %73 = vst [vmem:[#allocation1] ss:$2 sm:$0xff] %v69
    %v74 = vld.sshfl [vmem:[#allocation1] sm:$0xff pattern:$0x75316420]
    %v75 = vld.sshfl [vmem:[#allocation1 + $0x8] sm:$0xff pattern:$0x75316420]
    %s76 = scalar_lea.vmem [#allocation1], 16
    %77 = vst [vmem:[%s76] ss:$2 sm:$0xff] %v70
    %v78 = vld.sshfl [vmem:[#allocation1 + $0x10] sm:$0xff pattern:$0x75316420]
    %v79 = vld.sshfl [vmem:[#allocation1 + $0x18] sm:$0xff pattern:$0x75316420]
    %v84 = vsel %vm46, %v74, 0.0
    %v85 = vsel %vm46, %v75, 0.0
    %v86 = vadd.f32 %v84, %v85
    %87 = vadd.xlane.f32.xlu0 %v86
    %v88 = vpop.xlane.xlu0 %87
    %v89 = vsel %vm46, %v78, 0.0
    %v90 = vsel %vm46, %v79, 0.0
    %v91 = vadd.f32 %v89, %v90
    %92 = vadd.xlane.f32.xlu0 %v91
    %v93 = vpop.xlane.xlu0 %92
    %v94 = vsel %vm46, %v88, 0.0
    %v95 = vsel %vm46, %v93, 0.0
    %v96 = vadd.f32 %v94, %v95
    %v97 = vmul.f32 %v96, 0.001953125
    %v98 = vld [vmem:[%s1] sm:$0xf]
    %v99 = vadd.f32 %v97, 1e-05
    %v100 = vrsqrt.pop %v99
    %v101 = vmul.f32 %v100, %v99
    %v102 = vmul.f32 %v101, %v100
    %v103 = vmul.f32 0.5, %v102
    %v104 = vsub.f32 1.5, %v103
    %v105 = vmul.f32 %v100, %v104
    %vm106 = vweird.f32 %v99
    %vm107 = vweird.f32 %v100
    %vm108 = vmor %vm106, %vm107
    %v109 = vsel %vm108, %v100, %v105
    %v110 = vmul.f32 %v98, %v109
    %112 = vset.pattern.permute.xlu0 0
    %113 = vperm.xlu0 %112, %v110
    %v114 = vpop.permute.xlu0 %113
    %v116 = vunpack.c.l.s4 839922192
    %v117 = vunpack.c.0.s8 %v116
    %v118 = vperm.slane %v114, %v117
    %v120 = vmul.f32 %v67, %v118
    %v121 = vmul.f32 %v68, %v118
    %v122 = vld [vmem:[%s2] sm:$0xf]
    %124 = vset.pattern.permute.xlu0 0
    %125 = vperm.xlu0 %124, %v122
    %v126 = vpop.permute.xlu0 %125
    %v128 = vunpack.c.l.s4 839922192
    %v129 = vunpack.c.0.s8 %v128
    %v130 = vperm.slane %v126, %v129
    %v132 = vadd.f32 %v120, %v130
    %v133 = vadd.f32 %v121, %v130
    %134 = vst [vmem:[#allocation5] sm:$0xff] %v132
    %135 = vst [vmem:[#allocation5 + $0x8] sm:$0xff] %v133
    // Predicated region
    $region18: #{tpu_custom_call.1} parent=1 // pred_check
      _
    $region19: #{tpu_custom_call.1} parent=1 // pred_check_branch
      %137 = sbr.rel (0) target = $region21
    $region20: #{tpu_custom_call.1} parent=1 // pred_region
      %139 = vsyncadd [#allocation4], 0
      %s140 = sshll.u32 [#allocation5], 4
      %s141 = int_to_ptr.vmem [resolvable:$true] %s140
      %s142 = sshll.u32 %s3, 4
      %s143 = int_to_ptr.hbm [resolvable:$true] %s142
      %148 = dma.vmem_to_hbm [thread:$0]  %s141, 256, %s143, [#allocation4], 128, 128, 8
    $region21: #{tpu_custom_call.1} parent=1 // pred_fallthru
      _
    // Predicated region
    $region22: #{tpu_custom_call.1} parent=1 // pred_check
      _
    $region23: #{tpu_custom_call.1} parent=1 // pred_check_branch
      %150 = sbr.rel (0) target = $region25
    $region24: #{tpu_custom_call.1} parent=1 // pred_region
      %152 = dma.done [#allocation4], 256
    $region25: #{tpu_custom_call.1} parent=1 // pred_fallthru
      _
    %153 = vsyncpa [#allocation3], 1
    %154 = vsyncpa [#allocation4], 1

</llo_original>
